<compile_context>
chip_gen: v7x
topology: tpu7x:2x2x1
jax: 0.10.0
libtpu: 0.0.40
codegen_flags: <defaults>
</compile_context>

<pallas_src>
import math
import numpy as np

import jax
import jax.numpy as jnp
from jax.experimental import pallas as pl
from jax.experimental.pallas import tpu as pltpu

HDIM = 128
BN_EPS = 1e-5


def _round_up(x, m):
    return (x + m - 1) // m * m


# ----------------------------------------------------------------------------
# Tiled matmul + bias (MXU, f32 accumulator, optional bf16 operands)
# ----------------------------------------------------------------------------
def _mm_bias_kernel(a_ref, b_ref, bias_ref, o_ref, acc_ref):
    @pl.when(pl.program_id(2) == 0)
    def _():
        acc_ref[...] = jnp.zeros_like(acc_ref)

    acc_ref[...] += jnp.dot(a_ref[...], b_ref[...],
                            preferred_element_type=jnp.float32)

    @pl.when(pl.program_id(2) == pl.num_programs(2) - 1)
    def _():
        o_ref[...] = (acc_ref[...] + bias_ref[...]).astype(o_ref.dtype)


def matmul_bias(a, b, bias, *, use_bf16=True, tm=256, tn=256, tk=512):
    """out[M, N] = a[M, K] @ b[K, N] + bias[N], tiled over an (M, N, K) grid."""
    M, K = a.shape
    K2, N = b.shape
    assert K == K2 and bias.shape == (N,)

    Mp, Kp, Np = _round_up(M, 8), _round_up(K, 128), _round_up(N, 128)
    tm, tk, tn = min(tm, Mp), min(tk, Kp), min(tn, Np)
    Mp, Kp, Np = _round_up(Mp, tm), _round_up(Kp, tk), _round_up(Np, tn)

    a = jnp.pad(a, ((0, Mp - M), (0, Kp - K)))
    b = jnp.pad(b, ((0, Kp - K), (0, Np - N)))
    bias = jnp.pad(bias, (0, Np - N)).reshape(1, Np).astype(jnp.float32)
    if use_bf16:
        a = a.astype(jnp.bfloat16)
        b = b.astype(jnp.bfloat16)

    out = pl.pallas_call(
        _mm_bias_kernel,
        out_shape=jax.ShapeDtypeStruct((Mp, Np), jnp.float32),
        grid_spec=pltpu.PrefetchScalarGridSpec(
            num_scalar_prefetch=0,
            grid=(Mp // tm, Np // tn, Kp // tk),
            in_specs=[
                pl.BlockSpec((tm, tk), lambda i, j, k: (i, k)),
                pl.BlockSpec((tk, tn), lambda i, j, k: (k, j)),
                pl.BlockSpec((1, tn), lambda i, j, k: (0, j)),
            ],
            out_specs=pl.BlockSpec((tm, tn), lambda i, j, k: (i, j)),
            scratch_shapes=[pltpu.VMEM((tm, tn), jnp.float32)],
        ),
        compiler_params=pltpu.CompilerParams(
            dimension_semantics=("parallel", "parallel", "arbitrary"),
            vmem_limit_bytes=32 * 1024 * 1024,
        ),
    )(a, b, bias)
    return out[:M, :N]


# ----------------------------------------------------------------------------
# BatchNorm2d (training stats, biased var) + ReLU on (rows, C), tiled 2-pass
# ----------------------------------------------------------------------------
def _bn_stats_kernel(x_ref, sum_ref, sq_ref):
    @pl.when(pl.program_id(0) == 0)
    def _():
        sum_ref[...] = jnp.zeros_like(sum_ref)
        sq_ref[...] = jnp.zeros_like(sq_ref)

    x = x_ref[...]
    sum_ref[...] += jnp.sum(x, axis=0, keepdims=True)
    sq_ref[...] += jnp.sum(x * x, axis=0, keepdims=True)


def bn_relu_rows(x, gamma, beta, *, tm=1024):
    """Training-mode BatchNorm (biased var, eps=1e-5) + ReLU over rows of x[M, C]."""
    M, C = x.shape
    Mp = _round_up(M, 8)
    tm = min(tm, Mp)
    Mp = _round_up(Mp, tm)
    xp = jnp.pad(x, ((0, Mp - M), (0, 0)))      # zero pad rows: no effect on sums
    nb = Mp // tm

    ssum, ssq = pl.pallas_call(
        _bn_stats_kernel,
        out_shape=(jax.ShapeDtypeStruct((1, C), jnp.float32),
                   jax.ShapeDtypeStruct((1, C), jnp.float32)),
        grid_spec=pltpu.PrefetchScalarGridSpec(
            num_scalar_prefetch=0,
            grid=(nb,),
            in_specs=[pl.BlockSpec((tm, C), lambda i: (i, 0))],
            out_specs=(pl.BlockSpec((1, C), lambda i: (0, 0)),
                       pl.BlockSpec((1, C), lambda i: (0, 0))),
        ),
        compiler_params=pltpu.CompilerParams(
            dimension_semantics=("arbitrary",)),
    )(xp)

    inv_m = 1.0 / M  # real row count (padded zero rows excluded)

    def _bn_apply_kernel(x_ref, s_ref, q_ref, g_ref, b_ref, o_ref):
        mean = s_ref[...] * inv_m
        var = q_ref[...] * inv_m - mean * mean
        scale = g_ref[...] * jax.lax.rsqrt(var + BN_EPS)
        shift = b_ref[...] - mean * scale
        o_ref[...] = jnp.maximum(x_ref[...] * scale + shift, 0.0)

    out = pl.pallas_call(
        _bn_apply_kernel,
        out_shape=jax.ShapeDtypeStruct((Mp, C), jnp.float32),
        grid_spec=pltpu.PrefetchScalarGridSpec(
            num_scalar_prefetch=0,
            grid=(nb,),
            in_specs=[pl.BlockSpec((tm, C), lambda i: (i, 0))]
                     + [pl.BlockSpec((1, C), lambda i: (0, 0))] * 4,
            out_specs=pl.BlockSpec((tm, C), lambda i: (i, 0)),
        ),
        compiler_params=pltpu.CompilerParams(
            dimension_semantics=("parallel",)),
    )(xp, ssum, ssq,
      gamma.reshape(1, C).astype(jnp.float32),
      beta.reshape(1, C).astype(jnp.float32))
    return out[:M]


# ----------------------------------------------------------------------------
# sum over layers + sigmoid, lane-dense (last dim = imsize*imsize)
# ----------------------------------------------------------------------------
def _sum_sigmoid_kernel(x_ref, o_ref):
    s = jnp.sum(x_ref[...], axis=0)
    o_ref[...] = 1.0 / (1.0 + jnp.exp(-s))


def sum_sigmoid(stacked):
    """stacked[L, R, D] -> sigmoid(sum over L), shape [R, D]."""
    L, R, D = stacked.shape
    Rp = _round_up(R, 8)
    tm = min(256, Rp)
    Rp = _round_up(Rp, tm)
    x = jnp.pad(stacked, ((0, 0), (0, Rp - R), (0, 0)))
    out = pl.pallas_call(
        _sum_sigmoid_kernel,
        out_shape=jax.ShapeDtypeStruct((Rp, D), jnp.float32),
        grid_spec=pltpu.PrefetchScalarGridSpec(
            num_scalar_prefetch=0,
            grid=(Rp // tm,),
            in_specs=[pl.BlockSpec((L, tm, D), lambda i: (0, i, 0))],
            out_specs=pl.BlockSpec((tm, D), lambda i: (i, 0)),
        ),
        compiler_params=pltpu.CompilerParams(
            dimension_semantics=("parallel",)),
    )(x)
    return out[:R]


# ----------------------------------------------------------------------------
# Bicubic upsample (PyTorch semantics, align_corners=False, A=-0.75) as one
# Kronecker matmul per layer.
# ----------------------------------------------------------------------------
def _bicubic_matrix(in_size, out_size):
    A = -0.75

    def cubic1(x):
        return ((A + 2.0) * x - (A + 3.0)) * x * x + 1.0

    def cubic2(x):
        return ((A * x - 5.0 * A) * x + 8.0 * A) * x - 4.0 * A

    M = np.zeros((out_size, in_size), dtype=np.float64)
    scale = in_size / out_size
    for j in range(out_size):
        x = (j + 0.5) * scale - 0.5
        xf = math.floor(x)
        t = x - xf
        ws = [cubic2(t + 1.0), cubic1(t), cubic1(1.0 - t), cubic2(2.0 - t)]
        for k in range(4):
            idx = min(max(xf - 1 + k, 0), in_size - 1)
            M[j, idx] += ws[k]
    return M


def _bicubic_kron_t(h, w, out_size):
    ah = _bicubic_matrix(h, out_size)                 # (S, H)
    aw = _bicubic_matrix(w, out_size)                 # (S, W)
    k = np.kron(ah, aw)                               # (S*S, H*W)
    return jnp.asarray(k.T.astype(np.float32))        # (H*W, S*S)


def bicubic_upsample_planes(planes, h, w, out_size):
    """planes[B, h*w] -> [B, out_size*out_size] via one lane-dense matmul."""
    kron_t = _bicubic_kron_t(h, w, out_size)
    zero_bias = jnp.zeros((out_size * out_size,), jnp.float32)
    return matmul_bias(planes, kron_t, zero_bias, use_bf16=False)


# ----------------------------------------------------------------------------
# ConvTranspose2d(k=3, s=2, p=1, output_padding=1) via sub-pixel decomposition
# ----------------------------------------------------------------------------
# phase -> {tap: (kh, kw)}; taps are x offsets t0=(0,0), t1=(0,+1), t2=(+1,0),
# t3=(+1,+1); phases are output sub-pixels (dh, dw) = (0,0), (0,1), (1,0), (1,1).
_PHASE_TAPS = (
    {0: (1, 1)},
    {0: (1, 2), 1: (1, 0)},
    {0: (2, 1), 2: (0, 1)},
    {0: (2, 2), 1: (2, 0), 2: (0, 2), 3: (0, 0)},
)


def _build_patches(x_nhwc):
    """4-tap patches for the sub-pixel decomposition: (N*H*W, 4*Cin)."""
    N, H, W, C = x_nhwc.shape
    xp = jnp.pad(x_nhwc, ((0, 0), (0, 1), (0, 1), (0, 0)))
    taps = [xp[:, dh:dh + H, dw:dw + W, :] for dh in (0, 1) for dw in (0, 1)]
    return jnp.concatenate(taps, axis=-1).reshape(N * H * W, 4 * C)


def _build_phase_weight(w, b):
    """w[Cin, Cout, 3, 3], b[Cout] -> Wc[4*Cin, 4*Cout], bc[4*Cout]."""
    cin, cout = w.shape[0], w.shape[1]
    rows = []
    for tap in range(4):
        cols = []
        for phase in range(4):
            kk = _PHASE_TAPS[phase].get(tap)
            cols.append(w[:, :, kk[0], kk[1]] if kk is not None
                        else jnp.zeros((cin, cout), w.dtype))
        rows.append(jnp.concatenate(cols, axis=1))
    return jnp.concatenate(rows, axis=0), jnp.tile(b, 4)


def _pixel_shuffle(y_rows, n, h, w, cout):
    """(N*H*W, 4*Cout) phase-major -> (N, 2H, 2W, Cout)."""
    y = y_rows.reshape(n, h, w, 2, 2, cout).transpose(0, 1, 3, 2, 4, 5)
    return y.reshape(n, 2 * h, 2 * w, cout)


def conv_transpose_2x_nhwc(x_nhwc, w, b, *, use_bf16=True):
    """Exact ConvTranspose2d(3, stride=2, pad=1, output_padding=1), NHWC in/out."""
    n, h, wd, _ = x_nhwc.shape
    cout = w.shape[1]
    patches = _build_patches(x_nhwc)
    wc, bc = _build_phase_weight(w, b)
    y = matmul_bias(patches, wc, bc, use_bf16=use_bf16)    # (N*H*W, 4*Cout)
    return _pixel_shuffle(y, n, h, wd, cout)


def _ref_conv_transpose_2x(x_nhwc, w, b):
    """Pure-JAX zero-insertion reference (used only for the self-check)."""
    n, h, wd, cin = x_nhwc.shape
    cout = w.shape[1]
    xz = jnp.zeros((n, 2 * h - 1, 2 * wd - 1, cin), jnp.float32)
    xz = xz.at[:, ::2, ::2, :].set(x_nhwc)
    xp = jnp.pad(xz, ((0, 0), (1, 2), (1, 2), (0, 0)))
    wf = jnp.flip(w, axis=(2, 3))
    ho, wo = 2 * h, 2 * wd
    out = jnp.zeros((n, ho, wo, cout), jnp.float32)
    for kh in range(3):
        for kw in range(3):
            out = out + jnp.einsum("nhwc,cd->nhwd",
                                   xp[:, kh:kh + ho, kw:kw + wo, :],
                                   wf[:, :, kh, kw],
                                   precision=jax.lax.Precision.HIGHEST)
    return out + b


# ----------------------------------------------------------------------------
# Module forward
# ----------------------------------------------------------------------------
def draw_layer_forward(p, x_nhwc, layers_flat, img_c, imsize, need_act):
    n, h, w, _ = x_nhwc.shape
    cout = p["w"].shape[1]
    y_sp = conv_transpose_2x_nhwc(x_nhwc, p["w"], p["b"])    # (N, 2H, 2W, Cout)
    ho, wo = 2 * h, 2 * w

    logits = y_sp[..., :img_c]                               # (N, Ho, Wo, img_c)
    planes = logits.transpose(0, 3, 1, 2).reshape(n * img_c, ho * wo)
    layers_flat.append(bicubic_upsample_planes(planes, ho, wo, imsize))

    out = None
    if need_act:
        rows = y_sp.reshape(n * ho * wo, cout)
        out = bn_relu_rows(rows, p["gamma"], p["beta"]).reshape(n, ho, wo, cout)
    return out, layers_flat


def auto_layer_forward(params, imgs, channels, imsize, zdim):
    n = imgs.shape[0]
    # TODO(synk): Encoder class not provided; deterministic linear projection.
    flat = imgs.reshape(n, channels * imsize * imsize)
    z = matmul_bias(flat, params["enc_w"], params["enc_b"])  # (N, zdim)
    x = z.reshape(n, 1, 1, zdim)                             # NHWC, spatial 1x1

    layers_flat = []
    nlayers = len(params["draw"])
    for i, lp in enumerate(params["draw"]):
        # The final DrawLayer's BN+ReLU output is discarded by AutoLayer.forward.
        need_act = i < nlayers - 1
        x, layers_flat = draw_layer_forward(lp, x, layers_flat,
                                            channels, imsize, need_act)

    stacked = jnp.stack(layers_flat, axis=0)                 # (L, N*C, S*S)
    recon = sum_sigmoid(stacked).reshape(n, channels, imsize, imsize)
    layers = [lf.reshape(n, channels, imsize, imsize) for lf in layers_flat]
    return recon, layers


# ----------------------------------------------------------------------------
# Deterministic parameter initialization (shapes from the PyTorch __init__)
# ----------------------------------------------------------------------------
def init_params(key, channels, imsize, zdim):
    upsamples = int(math.log2(imsize))
    keys = jax.random.split(key, 1 + 2 * upsamples)
    params = {
        "enc_w": jax.random.normal(
            keys[0], (channels * imsize * imsize, zdim), jnp.float32) * 0.02,
        "enc_b": jnp.zeros((zdim,), jnp.float32),
    }
    draw = []
    in_c = zdim
    for i in range(upsamples):
        out_c = channels if i == upsamples - 1 else HDIM
        bound = 1.0 / math.sqrt(in_c * 9)
        draw.append({
            "w": jax.random.uniform(keys[1 + 2 * i], (in_c, out_c, 3, 3),
                                    jnp.float32, -bound, bound),
            "b": jax.random.uniform(keys[2 + 2 * i], (out_c,),
                                    jnp.float32, -bound, bound),
            "gamma": jnp.ones((out_c,), jnp.float32),
            "beta": jnp.zeros((out_c,), jnp.float32),
        })
        in_c = out_c
    params["draw"] = draw
    return params


if __name__ == "__main__":
    channels, imsize, zdim, batch = 4, 16, 32, 2
    key = jax.random.PRNGKey(0)
    pkey, xkey, ckey = jax.random.split(key, 3)

    # Self-check: sub-pixel ConvTranspose decomposition vs zero-insertion reference
    # (loose tolerance to allow bf16 MXU operands).
    k1, k2, k3 = jax.random.split(ckey, 3)
    xc = jax.random.normal(k1, (1, 3, 3, 8), jnp.float32)
    wc = jax.random.normal(k2, (8, 8, 3, 3), jnp.float32)
    bc = jax.random.normal(k3, (8,), jnp.float32)
    got = conv_transpose_2x_nhwc(xc, wc, bc)
    ref = _ref_conv_transpose_2x(xc, wc, bc)
    err = float(jnp.max(jnp.abs(got - ref)))
    assert err < 0.05 * (float(jnp.max(jnp.abs(ref))) + 1.0), err

    params = init_params(pkey, channels, imsize, zdim)
    imgs = jax.random.uniform(xkey, (batch, channels, imsize, imsize), jnp.float32)

    fwd = jax.jit(lambda prm, x: auto_layer_forward(prm, x, channels, imsize, zdim))
    recon, layers = fwd(params, imgs)
    jax.block_until_ready(recon)
    for l in layers:
        jax.block_until_ready(l)

    assert recon.shape == imgs.shape
    assert len(layers) == int(math.log2(imsize))
    assert all(l.shape == imgs.shape for l in layers)
    assert bool(jnp.all((recon >= 0.0) & (recon <= 1.0)))
    print("KERNEL_OK")
</pallas_src>

<mosaic_0001>
module attributes {stable_mosaic.version = 11 : i64} {
  func.func @_mm_bias_kernel(%arg0: i32, %arg1: i32, %arg2: i32, %arg3: memref<16x128xbf16, #tpu.memory_space<vmem>>, %arg4: memref<128x128xbf16, #tpu.memory_space<vmem>>, %arg5: memref<1x128xf32, #tpu.memory_space<vmem>>, %arg6: memref<16x128xf32, #tpu.memory_space<vmem>>, %arg7: memref<16x128xf32, #tpu.memory_space<vmem>>) attributes {dimension_semantics = [#tpu.dimension_semantics<parallel>, #tpu.dimension_semantics<parallel>, #tpu.dimension_semantics<arbitrary>], iteration_bounds = array<i64: 1, 1, 1>, scalar_prefetch = 0 : i64, scratch_operands = 1 : i64, tpu.core_type = #tpu.core_type<tc>, window_params = [{transform_indices = @transform_0, window_bounds = array<i64: 16, 128>}, {transform_indices = @transform_1, window_bounds = array<i64: 128, 128>}, {transform_indices = @transform_2, window_bounds = array<i64: 1, 128>}, {transform_indices = @transform_3, window_bounds = array<i64: 16, 128>}]} {
    %c0_i32 = arith.constant 0 : i32
    %0 = arith.cmpi eq, %arg2, %c0_i32 : i32
    %1 = arith.extui %0 : i1 to i32
    %c0_i32_0 = arith.constant 0 : i32
    %2 = arith.cmpi ne, %1, %c0_i32_0 : i32
    scf.if %2 {
      %cst_10 = arith.constant 0.000000e+00 : f32
      %12 = vector.broadcast %cst_10 : f32 to vector<16x128xf32>
      %c0_11 = arith.constant 0 : index
      %c0_12 = arith.constant 0 : index
      %13 = vector.load %arg7[%c0_11, %c0_12] : memref<16x128xf32, #tpu.memory_space<vmem>>, vector<16x128xf32>
      tpu.vector_store %arg7[%c0_11, %c0_12], %12 {strides = array<i32>} : memref<16x128xf32, #tpu.memory_space<vmem>>, vector<16x128xf32>,
    } else {
    }
    %c0 = arith.constant 0 : index
    %c0_1 = arith.constant 0 : index
    %3 = vector.load %arg7[%c0, %c0_1] : memref<16x128xf32, #tpu.memory_space<vmem>>, vector<16x128xf32>
    %c0_2 = arith.constant 0 : index
    %c0_3 = arith.constant 0 : index
    %4 = vector.load %arg3[%c0_2, %c0_3] : memref<16x128xbf16, #tpu.memory_space<vmem>>, vector<16x128xbf16>
    %c0_4 = arith.constant 0 : index
    %c0_5 = arith.constant 0 : index
    %5 = vector.load %arg4[%c0_4, %c0_5] : memref<128x128xbf16, #tpu.memory_space<vmem>>, vector<128x128xbf16>
    %cst = arith.constant dense<0.000000e+00> : vector<16x128xf32>
    %6 = tpu.matmul %4, %5, %cst {dimension_numbers = #tpu.dot_dimension_numbers<[1], [0], [0], [1], [0, 0, 1, 1], [], []>} : vector<16x128xbf16>, vector<128x128xbf16>, vector<16x128xf32> -> vector<16x128xf32>
    %7 = arith.addf %3, %6 : vector<16x128xf32>
    %c0_6 = arith.constant 0 : index
    %c0_7 = arith.constant 0 : index
    %8 = vector.load %arg7[%c0_6, %c0_7] : memref<16x128xf32, #tpu.memory_space<vmem>>, vector<16x128xf32>
    tpu.vector_store %arg7[%c0_6, %c0_7], %7 {strides = array<i32>} : memref<16x128xf32, #tpu.memory_space<vmem>>, vector<16x128xf32>,
    %c0_i32_8 = arith.constant 0 : i32
    %9 = arith.cmpi eq, %arg2, %c0_i32_8 : i32
    %10 = arith.extui %9 : i1 to i32
    %c0_i32_9 = arith.constant 0 : i32
    %11 = arith.cmpi ne, %10, %c0_i32_9 : i32
    scf.if %11 {
      %c0_10 = arith.constant 0 : index
      %c0_11 = arith.constant 0 : index
      %12 = vector.load %arg7[%c0_10, %c0_11] : memref<16x128xf32, #tpu.memory_space<vmem>>, vector<16x128xf32>
      %c0_12 = arith.constant 0 : index
      %c0_13 = arith.constant 0 : index
      %13 = vector.load %arg5[%c0_12, %c0_13] : memref<1x128xf32, #tpu.memory_space<vmem>>, vector<1x128xf32>
      %14 = vector.broadcast %13 : vector<1x128xf32> to vector<16x128xf32>
      %15 = arith.addf %12, %14 : vector<16x128xf32>
      %c0_14 = arith.constant 0 : index
      %c0_15 = arith.constant 0 : index
      %16 = vector.load %arg6[%c0_14, %c0_15] : memref<16x128xf32, #tpu.memory_space<vmem>>, vector<16x128xf32>
      tpu.vector_store %arg6[%c0_14, %c0_15], %15 {strides = array<i32>} : memref<16x128xf32, #tpu.memory_space<vmem>>, vector<16x128xf32>,
    } else {
    }
    return
  }
  func.func @transform_0(%arg0: i32, %arg1: i32, %arg2: i32) -> (i32, i32) {
    %c0_i32 = arith.constant 0 : i32
    return %arg0, %arg2 : i32, i32
  }
  func.func @transform_1(%arg0: i32, %arg1: i32, %arg2: i32) -> (i32, i32) {
    %c0_i32 = arith.constant 0 : i32
    return %arg2, %arg1 : i32, i32
  }
  func.func @transform_2(%arg0: i32, %arg1: i32, %arg2: i32) -> (i32, i32) {
    %c0_i32 = arith.constant 0 : i32
    %c0_i32_0 = arith.constant 0 : i32
    return %c0_i32, %arg1 : i32, i32
  }
  func.func @transform_3(%arg0: i32, %arg1: i32, %arg2: i32) -> (i32, i32) {
    %c0_i32 = arith.constant 0 : i32
    return %arg0, %arg1 : i32, i32
  }
}

</mosaic_0001>

<llo_original>
// kernel: tpu_custom_call.1
$region0: #{tpu_custom_call.1}
  #allocation0 [shape = 'u32[]', space=smem, size = 0x4, offset = 0x4, fixed_abs, tag = 'smem constant byte address 0x4 - core index']
  #allocation1 [shape = 'u32[144,128]{1,0:T(1,128)}', space=vmem, size = 0x12000, scoped, tag = 'internal scratch']
  #allocation2 [shape = 'f32[16,128]{1,0:T(8,128)}', space=vmem, size = 0x2000, scoped, tag = 'scratch operand']
  %s0 = inlined_call_operand.hbm [shape: bf16[16,128], index: 0, kind: input, shape index: {}]
  %s1 = inlined_call_operand.hbm [shape: bf16[128,128], index: 1, kind: input, shape index: {}]
  %s2 = inlined_call_operand.vmem [shape: f32[1,128], index: 2, kind: input, shape index: {}]
  %s3 = inlined_call_operand.hbm [shape: f32[16,128], index: 3, kind: output, shape index: {}]
  %s4 = sld [smem:[#allocation0]]
  $region38: #{tpu_custom_call.1} parent=0
    _
  %s6 = ssub.s32 1, %s4
  %s7 = scalar_select 0, %s6, %s4
  $region1: #{tpu_custom_call.1} parent=0
    #allocation3 [shape = 'u8[4096]{0}', space=vmem, size = 0x1000, scoped, tag = 'input window, operand 0, single buffered']
    #allocation4 [shape = 's32[1]{0}', space=sflag, size = 0x4, scoped, tag = 'scoped memory for tpu_custom_call.1']
    #allocation5 [shape = 's32[1]{0}', space=sflag, size = 0x4, scoped, tag = 'scoped memory for tpu_custom_call.1']
    #allocation6 [shape = 'u8[32768]{0}', space=vmem, size = 0x8000, scoped, tag = 'input window, operand 1, single buffered']
    #allocation7 [shape = 's32[1]{0}', space=sflag, size = 0x4, scoped, tag = 'scoped memory for tpu_custom_call.1']
    #allocation8 [shape = 'u8[8192]{0}', space=vmem, size = 0x2000, scoped, tag = 'output window, operand 0, single buffered']
    %8 = vsyncpa [#allocation4], 0
    %9 = vsyncpa [#allocation7], 0
    %10 = vsyncpa [#allocation5], 0
    // Predicated region
    $region2: #{tpu_custom_call.1} parent=1 // pred_check
      _
    $region3: #{tpu_custom_call.1} parent=1 // pred_check_branch
      %12 = sbr.rel (0) target = $region5
    $region4: #{tpu_custom_call.1} parent=1 // pred_region
      %s14 = ssub.s32 128, 128
      %15 = vsyncadd [#allocation4], %s14
      %s16 = sshll.u32 [#allocation3], 4
      %s17 = int_to_ptr.vmem [resolvable:$true] %s16
      %22 = dma.hbm_to_vmem [thread:$0]  %s0, 128, %s17, [#allocation4], 64, 64, 4
    $region5: #{tpu_custom_call.1} parent=1 // pred_fallthru
      _
    // Predicated region
    $region6: #{tpu_custom_call.1} parent=1 // pred_check
      _
    $region7: #{tpu_custom_call.1} parent=1 // pred_check_branch
      %24 = sbr.rel (0) target = $region9
    $region8: #{tpu_custom_call.1} parent=1 // pred_region
      %s26 = ssub.s32 1024, 1024
      %27 = vsyncadd [#allocation7], %s26
      %s28 = sshll.u32 [#allocation6], 4
      %s29 = int_to_ptr.vmem [resolvable:$true] %s28
      %34 = dma.hbm_to_vmem [thread:$0]  %s1, 1024, %s29, [#allocation7], 64, 64, 4
    $region9: #{tpu_custom_call.1} parent=1 // pred_fallthru
      _
    // Predicated region
    $region10: #{tpu_custom_call.1} parent=1 // pred_check
      _
    $region11: #{tpu_custom_call.1} parent=1 // pred_check_branch
      %36 = sbr.rel (0) target = $region13
    $region12: #{tpu_custom_call.1} parent=1 // pred_region
      _
    $region13: #{tpu_custom_call.1} parent=1 // pred_fallthru
      _
    // Predicated region
    $region14: #{tpu_custom_call.1} parent=1 // pred_check
      _
    $region15: #{tpu_custom_call.1} parent=1 // pred_check_branch
      %38 = sbr.rel (0) target = $region17
    $region16: #{tpu_custom_call.1} parent=1 // pred_region
      %39 = dma.done [#allocation4], 128
    $region17: #{tpu_custom_call.1} parent=1 // pred_fallthru
      _
    // Predicated region
    $region18: #{tpu_custom_call.1} parent=1 // pred_check
      _
    $region19: #{tpu_custom_call.1} parent=1 // pred_check_branch
      %41 = sbr.rel (0) target = $region21
    $region20: #{tpu_custom_call.1} parent=1 // pred_region
      %42 = dma.done [#allocation7], 1024
    $region21: #{tpu_custom_call.1} parent=1 // pred_fallthru
      _
    %p44 = scmp.eq.s32.totalorder 0, 0
    // Predicated region
    $region22: #{tpu_custom_call.1} parent=1 // pred_check
      %p45 = pneg %p44
    $region23: #{tpu_custom_call.1} parent=1 // pred_check_branch
      %47 = sbr.rel (%p45) target = $region25
    $region24: #{tpu_custom_call.1} parent=1 // pred_region
      %48 = vst [vmem:[#allocation2] sm:$0xff] 0.0
      %49 = vst [vmem:[#allocation2 + $0x8] sm:$0xff] 0.0
    $region25: #{tpu_custom_call.1} parent=1 // pred_fallthru
      _
    %v50 = vld [vmem:[#allocation2] sm:$0xff]
    %v51 = vld [vmem:[#allocation2 + $0x8] sm:$0xff]
    %v52 = vld [vmem:[#allocation3] sm:$0xf]
    %v53 = vld [vmem:[#allocation3 + $0x4] sm:$0xf]
    %v54 = vld [vmem:[#allocation6] sm:$0xf]
    %v55 = vld [vmem:[#allocation6 + $0x4] sm:$0xf]
    %v56 = vld [vmem:[#allocation6 + $0x8] sm:$0xf]
    %v57 = vld [vmem:[#allocation6 + $0xc] sm:$0xf]
    %v58 = vld [vmem:[#allocation6 + $0x10] sm:$0xf]
    %v59 = vld [vmem:[#allocation6 + $0x14] sm:$0xf]
    %v60 = vld [vmem:[#allocation6 + $0x18] sm:$0xf]
    %v61 = vld [vmem:[#allocation6 + $0x1c] sm:$0xf]
    %v62 = vld [vmem:[#allocation6 + $0x20] sm:$0xf]
    %v63 = vld [vmem:[#allocation6 + $0x24] sm:$0xf]
    %v64 = vld [vmem:[#allocation6 + $0x28] sm:$0xf]
    %v65 = vld [vmem:[#allocation6 + $0x2c] sm:$0xf]
    %v66 = vld [vmem:[#allocation6 + $0x30] sm:$0xf]
    %v67 = vld [vmem:[#allocation6 + $0x34] sm:$0xf]
    %v68 = vld [vmem:[#allocation6 + $0x38] sm:$0xf]
    %v69 = vld [vmem:[#allocation6 + $0x3c] sm:$0xf]
    %v72 = vunpack.c.l.b16 %v52
    %v73 = vunpack.c.l.b16 %v53
    %v74 = vpack.c.b16 %v73, %v72
    %v92 = vunpack.c.l.b16 %v54
    %v93 = vunpack.c.l.b16 %v55
    %v94 = vunpack.c.l.b16 %v56
    %v95 = vunpack.c.l.b16 %v57
    %v96 = vunpack.c.l.b16 %v58
    %v97 = vunpack.c.l.b16 %v59
    %v98 = vunpack.c.l.b16 %v60
    %v99 = vunpack.c.l.b16 %v61
    %v100 = vunpack.c.l.b16 %v62
    %v101 = vunpack.c.l.b16 %v63
    %v102 = vunpack.c.l.b16 %v64
    %v103 = vunpack.c.l.b16 %v65
    %v104 = vunpack.c.l.b16 %v66
    %v105 = vunpack.c.l.b16 %v67
    %v106 = vunpack.c.l.b16 %v68
    %v107 = vunpack.c.l.b16 %v69
    %v108 = vpack.c.b16 %v93, %v92
    %v109 = vpack.c.b16 %v95, %v94
    %v110 = vpack.c.b16 %v97, %v96
    %v111 = vpack.c.b16 %v99, %v98
    %v112 = vpack.c.b16 %v101, %v100
    %v113 = vpack.c.b16 %v103, %v102
    %v114 = vpack.c.b16 %v105, %v104
    %v115 = vpack.c.b16 %v107, %v106
    %124 = vmatprep.subr.bf16.mxu0 0
    %125 = vmatpush1.bf16.msra.mxu0 %v108
    %126 = vmatprep.subr.bf16.mxu0 0
    %127 = vmatpush1.bf16.msra.mxu0 %v109
    %128 = vmatprep.subr.bf16.mxu0 0
    %129 = vmatpush1.bf16.msra.mxu0 %v110
    %130 = vmatprep.subr.bf16.mxu0 0
    %131 = vmatpush1.bf16.msra.mxu0 %v111
    %132 = vmatprep.subr.bf16.mxu0 0
    %133 = vmatpush1.bf16.msra.mxu0 %v112
    %134 = vmatprep.subr.bf16.mxu0 0
    %135 = vmatpush1.bf16.msra.mxu0 %v113
    %136 = vmatprep.subr.bf16.mxu0 0
    %137 = vmatpush1.bf16.msra.mxu0 %v114
    %138 = vmatprep.subr.bf16.mxu0 0
    %139 = vmatpush1.bf16.msra.mxu0 %v115
    %140 = vmatprep.subr.bf16.mxu0 0
    %141 = vmatpush1.bf16.msra.mxu0 0
    %142 = vmatprep.subr.bf16.mxu0 0
    %143 = vmatpush1.bf16.msra.mxu0 0
    %144 = vmatprep.subr.bf16.mxu0 0
    %145 = vmatpush1.bf16.msra.mxu0 0
    %146 = vmatprep.subr.bf16.mxu0 0
    %147 = vmatpush1.bf16.msra.mxu0 0
    %148 = vmatprep.subr.bf16.mxu0 0
    %149 = vmatpush1.bf16.msra.mxu0 0
    %150 = vmatprep.subr.bf16.mxu0 0
    %151 = vmatpush1.bf16.msra.mxu0 0
    %152 = vmatprep.subr.bf16.mxu0 0
    %153 = vmatpush1.bf16.msra.mxu0 0
    %154 = vmatprep.subr.bf16.mxu0 0
    %155 = vmatpush1.bf16.msra.mxu0 0
    %156 = vmatprep.mubr.bf16.mxu0 0
    %157 = vmatmul.mubr.bf16.gmra.mrb[0].mxu0 %v74
    %v158 = vpop.f32.mrb[0].mxu0
    %v159 = vadd.f32 0.0, %v158
    %v160 = vpop.f32.mrb[0].mxu0
    %v161 = vpop.f32.mrb[0].mxu0
    %v162 = vadd.f32 0.0, %v161
    %v163 = vpop.f32.mrb[0].mxu0
    %164 = vdwg.mxu0
    %v165 = vadd.f32 %v50, %v159
    %v166 = vadd.f32 %v51, %v162
    %167 = vst [vmem:[#allocation2] sm:$0xff] %v165
    %168 = vst [vmem:[#allocation2 + $0x8] sm:$0xff] %v166
    // Predicated region
    $region26: #{tpu_custom_call.1} parent=1 // pred_check
      %p169 = pneg %p44
    $region27: #{tpu_custom_call.1} parent=1 // pred_check_branch
      %171 = sbr.rel (%p169) target = $region29
    $region28: #{tpu_custom_call.1} parent=1 // pred_region
      %v172 = vld [vmem:[#allocation2] sm:$0xff]
      %v173 = vld [vmem:[#allocation2 + $0x8] sm:$0xff]
      %v174 = vld [vmem:[%s2] sm:$0x1]
      %v176 = vlaneseq
      %v177 = vshrl.u32 %v176, 7
      %v178 = vsub.s32 0, %v177
      %v179 = vrot.slane %v174, %v178
      %v181 = vadd.f32 %v172, %v179
      %v182 = vadd.f32 %v173, %v179
      %183 = vst [vmem:[#allocation8] sm:$0xff] %v181
      %184 = vst [vmem:[#allocation8 + $0x8] sm:$0xff] %v182
    $region29: #{tpu_custom_call.1} parent=1 // pred_fallthru
      _
    // Predicated region
    $region30: #{tpu_custom_call.1} parent=1 // pred_check
      _
    $region31: #{tpu_custom_call.1} parent=1 // pred_check_branch
      %186 = sbr.rel (0) target = $region33
    $region32: #{tpu_custom_call.1} parent=1 // pred_region
      %s188 = ssub.s32 256, 256
      %189 = vsyncadd [#allocation5], %s188
      %s190 = sshll.u32 [#allocation8], 4
      %s191 = int_to_ptr.vmem [resolvable:$true] %s190
      %196 = dma.vmem_to_hbm [thread:$0]  %s191, 256, %s3, [#allocation5], 128, 128, 8
    $region33: #{tpu_custom_call.1} parent=1 // pred_fallthru
      _
    // Predicated region
    $region34: #{tpu_custom_call.1} parent=1 // pred_check
      _
    $region35: #{tpu_custom_call.1} parent=1 // pred_check_branch
      %198 = sbr.rel (0) target = $region37
    $region36: #{tpu_custom_call.1} parent=1 // pred_region
      %199 = dma.done [#allocation5], 256
    $region37: #{tpu_custom_call.1} parent=1 // pred_fallthru
      _
    %200 = vsyncpa [#allocation4], 1
    %201 = vsyncpa [#allocation7], 1
    %202 = vsyncpa [#allocation5], 1

</llo_original>
